<compile_context>
chip_gen: v7x
topology: tpu7x:2x2x1
jax: 0.10.0
libtpu: 0.0.40
codegen_flags: <defaults>
</compile_context>

<pallas_src>
import functools
import math

import jax
import jax.numpy as jnp
from jax.experimental import pallas as pl
from jax.experimental.pallas import tpu as pltpu


def _round_up(x, m):
    return ((x + m - 1) // m) * m


def _rmsnorm_kernel(x_ref, w_ref, o_ref, *, true_dim, eps):
    # x_ref: (bt, dim_p) token tile; w_ref: (1, dim_p) resident weight row.
    x = x_ref[...].astype(jnp.float32)                      # torch: x.float()
    # Sum of squares over the (possibly zero-padded) lane axis; divide by the
    # TRUE feature dim so zero padding does not bias the mean.
    ssq = jnp.sum(x * x, axis=-1, keepdims=True)            # XLU reduce
    inv = jax.lax.rsqrt(ssq * (1.0 / float(true_dim)) + eps)  # EUP rsqrt
    normed = (x * inv).astype(o_ref.dtype)                  # torch: .type_as(x)
    o_ref[...] = normed * w_ref[...].astype(o_ref.dtype)    # * weight


@functools.partial(jax.jit, static_argnames=("eps", "block_tokens"))
def rmsnorm(x, weight, *, eps=1e-6, block_tokens=256):
    """RMSNorm over the last axis of x, scaled by weight (shape (dim,))."""
    orig_shape = x.shape
    dim = orig_shape[-1]
    tokens = math.prod(orig_shape[:-1]) if len(orig_shape) > 1 else 1
    x2d = x.reshape(tokens, dim)

    # Lane-dense last dim: pad features to a multiple of 128 (unmasked vst).
    dim_p = _round_up(dim, 128)
    # Big token tiles amortize the ~0.35us/grid-step overhead; shrink for tiny
    # inputs while keeping the sublane (8) constraint. Padded rows are zeros,
    # normalize to zeros, and are sliced off afterwards (no divisibility assert).
    bt = min(block_tokens, _round_up(tokens, 8))
    tokens_p = _round_up(tokens, bt)

    if tokens_p != tokens or dim_p != dim:
        x2d = jnp.pad(x2d, ((0, tokens_p - tokens), (0, dim_p - dim)))
    w2d = weight.reshape(1, dim)
    if dim_p != dim:
        w2d = jnp.pad(w2d, ((0, 0), (0, dim_p - dim)))

    grid = (tokens_p // bt,)
    itemsize = x.dtype.itemsize

    # Advisory roofline for XLA scheduling around the custom call.
    cost = pl.CostEstimate(
        flops=4 * tokens * dim,
        transcendentals=tokens,
        bytes_accessed=2 * tokens * dim * itemsize + dim * weight.dtype.itemsize,
    )
    # Explicit VMEM budget: double-buffered in/out tiles + weight + slack,
    # clamped to stay safe on v7x's smaller VMEM.
    vmem_est = 4 * bt * dim_p * max(itemsize, 4) + 2 * dim_p * 4 + (2 << 20)
    vmem_limit = min(max(vmem_est, 16 << 20), 48 << 20)

    out2d = pl.pallas_call(
        functools.partial(_rmsnorm_kernel, true_dim=dim, eps=eps),
        out_shape=jax.ShapeDtypeStruct((tokens_p, dim_p), x.dtype),
        grid_spec=pltpu.PrefetchScalarGridSpec(
            num_scalar_prefetch=0,
            grid=grid,
            in_specs=[
                pl.BlockSpec((bt, dim_p), lambda i: (i, 0)),  # token tile
                pl.BlockSpec((1, dim_p), lambda i: (0, 0)),   # weight (resident)
            ],
            out_specs=pl.BlockSpec((bt, dim_p), lambda i: (i, 0)),
        ),
        compiler_params=pltpu.CompilerParams(
            dimension_semantics=("parallel",),  # megacore-shards the token axis
            vmem_limit_bytes=vmem_limit,
        ),
        cost_estimate=cost,
    )(x2d, w2d)

    out2d = out2d[:tokens, :dim]
    return out2d.reshape(orig_shape)


def rmsnorm_ref(x, weight, eps=1e-6):
    """Pure-JAX reference matching the PyTorch RMSNorm semantics."""
    xf = x.astype(jnp.float32)
    inv = jax.lax.rsqrt(jnp.mean(xf * xf, axis=-1, keepdims=True) + eps)
    return (xf * inv).astype(x.dtype) * weight


if __name__ == "__main__":
    key = jax.random.PRNGKey(0)
    kx, kw, kx2, kw2 = jax.random.split(key, 4)

    # Lane-dense case: (B, S, dim) = (2, 8, 128).
    B, S, dim = 2, 8, 128
    x = jax.random.normal(kx, (B, S, dim), jnp.float32)
    w = 1.0 + 0.1 * jax.random.normal(kw, (dim,), jnp.float32)
    out = jax.block_until_ready(rmsnorm(x, w))
    ref = rmsnorm_ref(x, w)
    assert out.shape == x.shape
    assert jnp.allclose(out, ref, atol=1e-5, rtol=1e-5), "mismatch vs reference"

    # Non-multiple-of-128 feature dim exercises the lane-padding path.
    x2 = jax.random.normal(kx2, (3, 5, 48), jnp.float32)
    w2 = 1.0 + 0.1 * jax.random.normal(kw2, (48,), jnp.float32)
    out2 = jax.block_until_ready(rmsnorm(x2, w2))
    ref2 = rmsnorm_ref(x2, w2)
    assert out2.shape == x2.shape
    assert jnp.allclose(out2, ref2, atol=1e-5, rtol=1e-5), "mismatch vs reference (padded dim)"

    print("KERNEL_OK")
</pallas_src>

<mosaic_0001>
module attributes {stable_mosaic.version = 11 : i64} {
  func.func @_rmsnorm_kernel(%arg0: i32, %arg1: memref<16x128xf32, #tpu.memory_space<vmem>>, %arg2: memref<1x128xf32, #tpu.memory_space<vmem>>, %arg3: memref<16x128xf32, #tpu.memory_space<vmem>>) attributes {dimension_semantics = [#tpu.dimension_semantics<parallel>], iteration_bounds = array<i64: 1>, scalar_prefetch = 0 : i64, scratch_operands = 0 : i64, tpu.core_type = #tpu.core_type<tc>, window_params = [{transform_indices = @transform_0, window_bounds = array<i64: 16, 128>}, {pipeline_mode = #tpu.pipeline_mode<synchronous>, transform_indices = @transform_1, window_bounds = array<i64: 1, 128>}, {transform_indices = @transform_2, window_bounds = array<i64: 16, 128>}]} {
    %c0 = arith.constant 0 : index
    %c0_0 = arith.constant 0 : index
    %0 = vector.load %arg1[%c0, %c0_0] : memref<16x128xf32, #tpu.memory_space<vmem>>, vector<16x128xf32>
    %1 = arith.mulf %0, %0 : vector<16x128xf32>
    %cst = arith.constant dense<0.000000e+00> : vector<16xf32>
    %2 = vector.multi_reduction <add>, %1, %cst [1] : vector<16x128xf32> to vector<16xf32>
    %3 = vector.shape_cast %2 : vector<16xf32> to vector<16x1xf32>
    %cst_1 = arith.constant 7.812500e-03 : f32
    %4 = vector.broadcast %cst_1 : f32 to vector<16x1xf32>
    %5 = arith.mulf %3, %4 : vector<16x1xf32>
    %cst_2 = arith.constant 9.99999997E-7 : f32
    %6 = vector.broadcast %cst_2 : f32 to vector<16x1xf32>
    %7 = arith.addf %5, %6 : vector<16x1xf32>
    %8 = math.rsqrt %7 : vector<16x1xf32>
    %9 = vector.broadcast %8 : vector<16x1xf32> to vector<16x128xf32>
    %10 = arith.mulf %0, %9 : vector<16x128xf32>
    %c0_3 = arith.constant 0 : index
    %c0_4 = arith.constant 0 : index
    %11 = vector.load %arg2[%c0_3, %c0_4] : memref<1x128xf32, #tpu.memory_space<vmem>>, vector<1x128xf32>
    %12 = vector.broadcast %11 : vector<1x128xf32> to vector<16x128xf32>
    %13 = arith.mulf %10, %12 : vector<16x128xf32>
    %c0_5 = arith.constant 0 : index
    %c0_6 = arith.constant 0 : index
    %14 = vector.load %arg3[%c0_5, %c0_6] : memref<16x128xf32, #tpu.memory_space<vmem>>, vector<16x128xf32>
    tpu.vector_store %arg3[%c0_5, %c0_6], %13 {strides = array<i32>} : memref<16x128xf32, #tpu.memory_space<vmem>>, vector<16x128xf32>,
    return
  }
  func.func @transform_0(%arg0: i32) -> (i32, i32) {
    %c0_i32 = arith.constant 0 : i32
    %c0_i32_0 = arith.constant 0 : i32
    return %arg0, %c0_i32 : i32, i32
  }
  func.func @transform_1(%arg0: i32) -> (i32, i32) {
    %c0_i32 = arith.constant 0 : i32
    %c0_i32_0 = arith.constant 0 : i32
    %c0_i32_1 = arith.constant 0 : i32
    return %c0_i32, %c0_i32_0 : i32, i32
  }
  func.func @transform_2(%arg0: i32) -> (i32, i32) {
    %c0_i32 = arith.constant 0 : i32
    %c0_i32_0 = arith.constant 0 : i32
    return %arg0, %c0_i32 : i32, i32
  }
}

</mosaic_0001>

<llo_original>
// kernel: rmsnorm.1
$region0: #{rmsnorm.1}
  #allocation0 [shape = 'u32[]', space=smem, size = 0x4, offset = 0x4, fixed_abs, tag = 'smem constant byte address 0x4 - core index']
  #allocation1 [shape = 'u32[144,128]{1,0:T(1,128)}', space=vmem, size = 0x12000, scoped, tag = 'internal scratch']
  %s0 = inlined_call_operand.hbm [shape: f32[16,128], index: 0, kind: input, shape index: {}]
  %s1 = inlined_call_operand.vmem [shape: f32[1,128], index: 1, kind: input, shape index: {}]
  %s2 = inlined_call_operand.hbm [shape: f32[16,128], index: 2, kind: output, shape index: {}]
  %s3 = sld [smem:[#allocation0]]
  $region22: #{rmsnorm.1} parent=0
    _
  %s5 = ssub.s32 1, %s3
  %s6 = scalar_select 0, %s5, %s3
  $region1: #{rmsnorm.1} parent=0
    #allocation2 [shape = 'u8[8192]{0}', space=vmem, size = 0x2000, scoped, tag = 'input window, operand 0, single buffered']
    #allocation3 [shape = 's32[1]{0}', space=sflag, size = 0x4, scoped, tag = 'scoped memory for rmsnorm.1']
    #allocation4 [shape = 's32[1]{0}', space=sflag, size = 0x4, scoped, tag = 'scoped memory for rmsnorm.1']
    #allocation5 [shape = 'u8[8192]{0}', space=vmem, size = 0x2000, scoped, tag = 'output window, operand 0, single buffered']
    %7 = vsyncpa [#allocation3], 0
    %8 = vsyncpa [#allocation4], 0
    // Predicated region
    $region2: #{rmsnorm.1} parent=1 // pred_check
      _
    $region3: #{rmsnorm.1} parent=1 // pred_check_branch
      %10 = sbr.rel (0) target = $region5
    $region4: #{rmsnorm.1} parent=1 // pred_region
      %s12 = ssub.s32 256, 256
      %13 = vsyncadd [#allocation3], %s12
      %s14 = sshll.u32 [#allocation2], 4
      %s15 = int_to_ptr.vmem [resolvable:$true] %s14
      %20 = dma.hbm_to_vmem [thread:$0]  %s0, 256, %s15, [#allocation3], 128, 128, 8
    $region5: #{rmsnorm.1} parent=1 // pred_fallthru
      _
    // Predicated region
    $region6: #{rmsnorm.1} parent=1 // pred_check
      _
    $region7: #{rmsnorm.1} parent=1 // pred_check_branch
      %22 = sbr.rel (0) target = $region9
    $region8: #{rmsnorm.1} parent=1 // pred_region
      _
    $region9: #{rmsnorm.1} parent=1 // pred_fallthru
      _
    // Predicated region
    $region10: #{rmsnorm.1} parent=1 // pred_check
      _
    $region11: #{rmsnorm.1} parent=1 // pred_check_branch
      %24 = sbr.rel (0) target = $region13
    $region12: #{rmsnorm.1} parent=1 // pred_region
      %25 = dma.done [#allocation3], 256
    $region13: #{rmsnorm.1} parent=1 // pred_fallthru
      _
    %v26 = vld [vmem:[#allocation2] sm:$0xff]
    %v27 = vld [vmem:[#allocation2 + $0x8] sm:$0xff]
    %v28 = vmul.f32 %v26, %v26
    %v29 = vmul.f32 %v27, %v27
    %30 = vadd.xlane.f32.xlu0 %v28
    %v31 = vpop.xlane.xlu0 %30
    %32 = vadd.xlane.f32.xlu0 %v29
    %v33 = vpop.xlane.xlu0 %32
    %v34 = vmul.f32 %v31, 0.0078125
    %v35 = vmul.f32 %v33, 0.0078125
    %v36 = vadd.f32 %v34, 1e-06
    %v37 = vadd.f32 %v35, 1e-06
    %v38 = vrsqrt.pop %v36
    %v39 = vrsqrt.pop %v37
    %v40 = vmul.f32 %v26, %v38
    %v41 = vmul.f32 %v27, %v39
    %v42 = vld [vmem:[%s1] sm:$0x1]
    %v44 = vlaneseq
    %v45 = vshrl.u32 %v44, 7
    %v46 = vsub.s32 0, %v45
    %v47 = vrot.slane %v42, %v46
    %v49 = vmul.f32 %v40, %v47
    %v50 = vmul.f32 %v41, %v47
    %51 = vst [vmem:[#allocation5] sm:$0xff] %v49
    %52 = vst [vmem:[#allocation5 + $0x8] sm:$0xff] %v50
    // Predicated region
    $region14: #{rmsnorm.1} parent=1 // pred_check
      _
    $region15: #{rmsnorm.1} parent=1 // pred_check_branch
      %54 = sbr.rel (0) target = $region17
    $region16: #{rmsnorm.1} parent=1 // pred_region
      %s56 = ssub.s32 256, 256
      %57 = vsyncadd [#allocation4], %s56
      %s58 = sshll.u32 [#allocation5], 4
      %s59 = int_to_ptr.vmem [resolvable:$true] %s58
      %64 = dma.vmem_to_hbm [thread:$0]  %s59, 256, %s2, [#allocation4], 128, 128, 8
    $region17: #{rmsnorm.1} parent=1 // pred_fallthru
      _
    // Predicated region
    $region18: #{rmsnorm.1} parent=1 // pred_check
      _
    $region19: #{rmsnorm.1} parent=1 // pred_check_branch
      %66 = sbr.rel (0) target = $region21
    $region20: #{rmsnorm.1} parent=1 // pred_region
      %67 = dma.done [#allocation4], 256
    $region21: #{rmsnorm.1} parent=1 // pred_fallthru
      _
    %68 = vsyncpa [#allocation3], 1
    %69 = vsyncpa [#allocation4], 1

</llo_original>
